<compile_context>
chip_gen: v6e
topology: v6e:2x2x1
jax: 0.10.0
libtpu: 0.0.40
codegen_flags: <defaults>
</compile_context>

<pallas_src>
import math
import jax
import jax.numpy as jnp
from jax import lax
from jax.experimental import pallas as pl
from jax.experimental.pallas import tpu as pltpu

LANE = 128                       # hidden dim padded to full lane width
SUB = 8                          # class dim padded to one sublane tile
VMEM_LIMIT = 32 * 1024 * 1024    # << physical VMEM on v5e/v6e (128 MiB) and v7x (64 MiB)
UPSAMPLE_TILE_BUDGET = 20 * 1024 * 1024   # conservative per-step block budget


# ----------------------------------------------------------------------------
# Pallas kernel 1: fused  (im2col-patches @ W1 + b1) -> ReLU -> classifier
#   == backbone 3x3/s2 conv + ReLU followed by 1x1-conv classifier.
#   Output layout: classes on sublanes, M on lanes, bf16 store.
# ----------------------------------------------------------------------------
def head_kernel(p_ref, w1_ref, b1_ref, w2t_ref, b2_ref, o_ref):
    # conv-as-matmul: (tm, K) bf16 @ (K, Hd) bf16 -> f32 acc; bias/ReLU on f32 VPU.
    h = jnp.dot(p_ref[...], w1_ref[...], preferred_element_type=jnp.float32)
    h = jnp.maximum(h + b1_ref[...], 0.0)
    # classifier: (NCp, Hd) x (tm, Hd) contracting Hd -> (NCp, tm).
    # M sits on the lane axis (tm multiple of 128 or == M) -> unmasked vst,
    # and only NCp=8 sublane rows of bf16 reach HBM.
    o = lax.dot_general(w2t_ref[...], h.astype(jnp.bfloat16),
                        dimension_numbers=(((1,), (1,)), ((), ())),
                        preferred_element_type=jnp.float32)
    o_ref[...] = (o + b2_ref[...]).astype(jnp.bfloat16)


def head_call(patches, w1, b1, w2t, b2, *, tm=2048):
    M, K = patches.shape
    Hd = w1.shape[1]
    NCp = w2t.shape[0]
    tm = min(tm, M)              # tm == M (full) or 2048 (multiple of 128)
    grid = (pl.cdiv(M, tm),)
    return pl.pallas_call(
        head_kernel,
        out_shape=jax.ShapeDtypeStruct((NCp, M), jnp.bfloat16),
        grid=grid,
        in_specs=[
            pl.BlockSpec((tm, K), lambda i: (i, 0)),     # streamed patch tile
            pl.BlockSpec((K, Hd), lambda i: (0, 0)),     # VMEM-resident weights
            pl.BlockSpec((1, Hd), lambda i: (0, 0)),
            pl.BlockSpec((NCp, Hd), lambda i: (0, 0)),
            pl.BlockSpec((NCp, 1), lambda i: (0, 0)),
        ],
        out_specs=pl.BlockSpec((NCp, tm), lambda i: (0, i)),
        compiler_params=pltpu.CompilerParams(
            dimension_semantics=("parallel",),           # megacore-shardable
            vmem_limit_bytes=VMEM_LIMIT),
    )(patches, w1, b1, w2t, b2)


# ----------------------------------------------------------------------------
# Pallas kernel 2: separable bilinear upsample (align_corners=False)
#   out[p] = Wr @ img[p] @ WcT; all planes of a block handled by two batched
#   matmuls per grid step, output rows tiled on a second grid axis.
# ----------------------------------------------------------------------------
def upsample_kernel(img_ref, wr_ref, wct_ref, o_ref):
    pt, Ho, Wo = img_ref.shape
    th = wr_ref.shape[0]
    W = wct_ref.shape[1]
    # column pass: one lane-dense matmul over every plane in the block.
    t = jnp.dot(img_ref[...].reshape(pt * Ho, Wo), wct_ref[...],
                preferred_element_type=jnp.float32)                  # (pt*Ho, W)
    t = t.reshape(pt, Ho, W).astype(jnp.bfloat16)
    # row pass: plane-batched matmul, result lands directly in (pt, th, W).
    wr_b = jnp.broadcast_to(wr_ref[...], (pt, th, Ho))
    o_ref[...] = lax.dot_general(
        wr_b, t, dimension_numbers=(((2,), (1,)), ((0,), (0,))),
        preferred_element_type=jnp.float32)


def _upsample_tiles(P, Ho, Wo, H, W, budget=UPSAMPLE_TILE_BUDGET):
    """Pick (planes per step, output rows per step) under a VMEM budget that is
    safe on all generations (v7x has only 64 MiB/TC)."""
    def tile_bytes(pt, th):
        blocks = 2 * (pt * Ho * Wo * 2 + th * Ho * 2 + Wo * W * 2 + pt * th * W * 4)
        live = pt * Ho * W * 6 + pt * th * Ho * 2     # t (f32 + bf16) + broadcast Wr
        return blocks + live

    th = H if H <= 256 else 256
    pt = min(P, 8)
    while pt > 1 and tile_bytes(pt, th) > budget:
        pt = max(1, pt // 2)
    while th > 8 and tile_bytes(pt, th) > budget:
        th = max(8, ((th // 2) + 7) // 8 * 8)
    return pt, th


def upsample_call(planes, wr, wct):
    P, Ho, Wo = planes.shape
    H = wr.shape[0]
    W = wct.shape[1]
    pt, th = _upsample_tiles(P, Ho, Wo, H, W)
    grid = (pl.cdiv(P, pt), pl.cdiv(H, th))
    return pl.pallas_call(
        upsample_kernel,
        out_shape=jax.ShapeDtypeStruct((P, H, W), jnp.float32),
        grid=grid,
        in_specs=[
            pl.BlockSpec((pt, Ho, Wo), lambda i, j: (i, 0, 0)),
            pl.BlockSpec((th, Ho), lambda i, j: (j, 0)),      # streamed Wr rows
            pl.BlockSpec((Wo, W), lambda i, j: (0, 0)),       # resident
        ],
        out_specs=pl.BlockSpec((pt, th, W), lambda i, j: (i, j, 0)),
        compiler_params=pltpu.CompilerParams(
            dimension_semantics=("parallel", "parallel"),
            vmem_limit_bytes=VMEM_LIMIT),
    )(planes, wr, wct)


# ----------------------------------------------------------------------------
# Plain-JAX glue
# ----------------------------------------------------------------------------
def im2col(x, k=3, stride=2, pad=1):
    """x: (B, C, H, W) -> patches (B*Ho*Wo, C*k*k), column order c-major, tap-minor."""
    B, C, H, W = x.shape
    xp = jnp.pad(x, ((0, 0), (0, 0), (pad, pad), (pad, pad)))
    Ho = (H + 2 * pad - k) // stride + 1
    Wo = (W + 2 * pad - k) // stride + 1
    taps = []
    for di in range(k):
        for dj in range(k):
            taps.append(xp[:, :, di:di + stride * Ho:stride, dj:dj + stride * Wo:stride])
    p = jnp.stack(taps, axis=2)                    # (B, C, k*k, Ho, Wo)
    p = p.transpose(0, 3, 4, 1, 2).reshape(B * Ho * Wo, C * k * k)
    return p, Ho, Wo


def bilinear_matrix(out_size, in_size):
    """Row-interpolation matrix matching F.interpolate(mode='bilinear', align_corners=False)."""
    scale = in_size / out_size
    i = jnp.arange(out_size, dtype=jnp.float32)
    src = (i + 0.5) * scale - 0.5
    src = jnp.clip(src, 0.0, in_size - 1)
    i0 = jnp.floor(src).astype(jnp.int32)
    i1 = jnp.minimum(i0 + 1, in_size - 1)
    w1 = src - i0.astype(jnp.float32)
    w0 = 1.0 - w1
    m = jnp.zeros((out_size, in_size), jnp.float32)
    m = m.at[jnp.arange(out_size), i0].add(w0)
    m = m.at[jnp.arange(out_size), i1].add(w1)
    return m


def init_params(key, in_c=4, hidden=32, num_classes=2, k=3):
    """xavier_normal_ conv weights (as the module __init__ does), PyTorch-default
    uniform bias init, hidden padded to 128 lanes, classes padded to 8 sublanes."""
    k1, k2, k3, k4 = jax.random.split(key, 4)
    cin = 2 * in_c                                  # concat(x, y) channels
    # backbone conv: (hidden, cin, k, k), xavier_normal_
    std1 = math.sqrt(2.0 / (cin * k * k + hidden * k * k))
    w_conv = std1 * jax.random.normal(k1, (hidden, cin, k, k), jnp.float32)
    # classifier 1x1 conv: (num_classes, hidden, 1, 1), xavier_normal_
    std2 = math.sqrt(2.0 / (hidden + num_classes))
    w_cls = std2 * jax.random.normal(k2, (num_classes, hidden, 1, 1), jnp.float32)
    # nn.Conv2d default bias init: U(-1/sqrt(fan_in), 1/sqrt(fan_in))
    bnd1 = 1.0 / math.sqrt(cin * k * k)
    b_conv = jax.random.uniform(k3, (hidden,), jnp.float32, -bnd1, bnd1)
    bnd2 = 1.0 / math.sqrt(hidden)
    b_cls = jax.random.uniform(k4, (num_classes,), jnp.float32, -bnd2, bnd2)

    w1 = w_conv.reshape(hidden, cin * k * k).T                       # (cin*k*k, hidden)
    w2t = w_cls.reshape(num_classes, hidden)                         # (nc, hidden)

    hp = max(LANE, hidden)
    ncp = ((num_classes + SUB - 1) // SUB) * SUB
    w1p = jnp.zeros((cin * k * k, hp), jnp.float32).at[:, :hidden].set(w1)
    w2tp = jnp.zeros((ncp, hp), jnp.float32).at[:num_classes, :hidden].set(w2t)
    b1p = jnp.zeros((1, hp), jnp.float32).at[0, :hidden].set(b_conv)
    b2p = jnp.zeros((ncp, 1), jnp.float32).at[:num_classes, 0].set(b_cls)
    return {
        "w1": w1p.astype(jnp.bfloat16),             # (cin*k*k, 128) bf16
        "b1": b1p,                                  # (1, 128) f32
        "w2t": w2tp.astype(jnp.bfloat16),           # (8, 128) bf16, classes on sublanes
        "b2": b2p,                                  # (8, 1) f32
    }


def two_input_segmentation_forward(params, x, y, num_classes=2):
    # layout: NCHW, same axis convention as the PyTorch module.
    B, C, H, W = x.shape
    input_shape = x.shape[-1]

    # backbone (concat + 3x3/s2 conv + ReLU) + classifier (1x1 conv), fused.
    # TODO(synk): fuse the 9-tap im2col gather into the head kernel instead of
    # materializing `patches` in HBM (needs halo-aware input blocks).
    fused_in = jnp.concatenate([x, y], axis=1).astype(jnp.bfloat16)   # bf16 MXU feed
    patches, Ho, Wo = im2col(fused_in, k=3, stride=2, pad=1)          # (M, cin*9) bf16
    logits_cm = head_call(patches, params["w1"], params["b1"],
                          params["w2t"], params["b2"])                # (NCp, M) bf16

    # real classes (class-major) -> batch-major planes; this transpose is on the
    # small quarter-res bf16 logits, not on the full-res output.
    logits = logits_cm[:num_classes].reshape(num_classes, B, Ho, Wo)
    planes = logits.transpose(1, 0, 2, 3).reshape(B * num_classes, Ho, Wo)   # bf16

    # F.interpolate(x, size=input_shape, mode='bilinear', align_corners=False)
    # NOTE: Wr/WcT are fed in bf16 (rows sum to 1 only to ~1e-3); keep f32 here
    # if exact interpolation weights matter more than the small MXU cost.
    wr = bilinear_matrix(input_shape, Ho).astype(jnp.bfloat16)        # (H, Ho)
    wct = bilinear_matrix(input_shape, Wo).T.astype(jnp.bfloat16)     # (Wo, W)
    out = upsample_call(planes, wr, wct)                              # (B*nc, H, W) f32
    return out.reshape(B, num_classes, input_shape, input_shape)


def reference_forward(params, x, y, num_classes=2):
    """Pure-JAX f32 reference with the same (bf16-rounded) weights."""
    B, C, H, W = x.shape
    fused = jnp.concatenate([x, y], axis=1)
    patches, Ho, Wo = im2col(fused, k=3, stride=2, pad=1)             # f32
    w1 = params["w1"].astype(jnp.float32)
    w2 = params["w2t"].astype(jnp.float32).T                          # (Hd, NCp)
    h = jnp.maximum(patches @ w1 + params["b1"], 0.0)
    logits = (h @ w2 + params["b2"][:, 0])[:, :num_classes]
    logits = logits.reshape(B, Ho, Wo, num_classes).transpose(0, 3, 1, 2)
    wr = bilinear_matrix(H, Ho)
    wc = bilinear_matrix(W, Wo)
    return jnp.einsum("Hh,bchw,Ww->bcHW", wr, logits, wc)


if __name__ == "__main__":
    key = jax.random.PRNGKey(0)
    kx, ky, kp = jax.random.split(key, 3)

    B, C, S = 2, 4, 16
    x = jax.random.normal(kx, (B, C, S, S), jnp.float32)
    y = jax.random.normal(ky, (B, C, S, S), jnp.float32)
    params = init_params(kp, in_c=C, hidden=32, num_classes=2, k=3)

    out = two_input_segmentation_forward(params, x, y, num_classes=2)
    out = jax.block_until_ready(out)
    assert out.shape == (B, 2, S, S), out.shape
    assert bool(jnp.all(jnp.isfinite(out)))

    ref = reference_forward(params, x, y, num_classes=2)
    err = float(jnp.max(jnp.abs(out - ref)))
    assert err < 1e-1, f"max |out - ref| = {err}"
    print("KERNEL_OK")
</pallas_src>

<mosaic_0001>
module attributes {stable_mosaic.version = 11 : i64} {
  func.func @head_kernel(%arg0: i32, %arg1: memref<128x72xbf16, #tpu.memory_space<vmem>>, %arg2: memref<72x128xbf16, #tpu.memory_space<vmem>>, %arg3: memref<1x128xf32, #tpu.memory_space<vmem>>, %arg4: memref<8x128xbf16, #tpu.memory_space<vmem>>, %arg5: memref<8x1xf32, #tpu.memory_space<vmem>>, %arg6: memref<8x128xbf16, #tpu.memory_space<vmem>>) attributes {dimension_semantics = [#tpu.dimension_semantics<parallel>], iteration_bounds = array<i64: 1>, scalar_prefetch = 0 : i64, scratch_operands = 0 : i64, tpu.core_type = #tpu.core_type<tc>, window_params = [{transform_indices = @transform_0, window_bounds = array<i64: 128, 72>}, {pipeline_mode = #tpu.pipeline_mode<synchronous>, transform_indices = @transform_1, window_bounds = array<i64: 72, 128>}, {pipeline_mode = #tpu.pipeline_mode<synchronous>, transform_indices = @transform_2, window_bounds = array<i64: 1, 128>}, {pipeline_mode = #tpu.pipeline_mode<synchronous>, transform_indices = @transform_3, window_bounds = array<i64: 8, 128>}, {pipeline_mode = #tpu.pipeline_mode<synchronous>, transform_indices = @transform_4, window_bounds = array<i64: 8, 1>}, {transform_indices = @transform_5, window_bounds = array<i64: 8, 128>}]} {
    %c0 = arith.constant 0 : index
    %c0_0 = arith.constant 0 : index
    %0 = vector.load %arg1[%c0, %c0_0] : memref<128x72xbf16, #tpu.memory_space<vmem>>, vector<128x72xbf16>
    %c0_1 = arith.constant 0 : index
    %c0_2 = arith.constant 0 : index
    %1 = vector.load %arg2[%c0_1, %c0_2] : memref<72x128xbf16, #tpu.memory_space<vmem>>, vector<72x128xbf16>
    %cst = arith.constant dense<0.000000e+00> : vector<128x128xf32>
    %2 = tpu.matmul %0, %1, %cst {dimension_numbers = #tpu.dot_dimension_numbers<[1], [0], [0], [1], [0, 0, 1, 1], [], []>} : vector<128x72xbf16>, vector<72x128xbf16>, vector<128x128xf32> -> vector<128x128xf32>
    %c0_3 = arith.constant 0 : index
    %c0_4 = arith.constant 0 : index
    %3 = vector.load %arg3[%c0_3, %c0_4] : memref<1x128xf32, #tpu.memory_space<vmem>>, vector<1x128xf32>
    %4 = vector.broadcast %3 : vector<1x128xf32> to vector<128x128xf32>
    %5 = arith.addf %2, %4 : vector<128x128xf32>
    %cst_5 = arith.constant 0.000000e+00 : f32
    %6 = vector.broadcast %cst_5 : f32 to vector<128x128xf32>
    %7 = arith.maximumf %5, %6 : vector<128x128xf32>
    %c0_6 = arith.constant 0 : index
    %c0_7 = arith.constant 0 : index
    %8 = vector.load %arg4[%c0_6, %c0_7] : memref<8x128xbf16, #tpu.memory_space<vmem>>, vector<8x128xbf16>
    %9 = arith.truncf %7 : vector<128x128xf32> to vector<128x128xbf16>
    %cst_8 = arith.constant dense<0.000000e+00> : vector<8x128xf32>
    %10 = tpu.matmul %8, %9, %cst_8 {dimension_numbers = #tpu.dot_dimension_numbers<[1], [1], [0], [0], [0, 0, 1, 0], [], []>} : vector<8x128xbf16>, vector<128x128xbf16>, vector<8x128xf32> -> vector<8x128xf32>
    %c0_9 = arith.constant 0 : index
    %c0_10 = arith.constant 0 : index
    %11 = vector.load %arg5[%c0_9, %c0_10] : memref<8x1xf32, #tpu.memory_space<vmem>>, vector<8x1xf32>
    %12 = vector.broadcast %11 : vector<8x1xf32> to vector<8x128xf32>
    %13 = arith.addf %10, %12 : vector<8x128xf32>
    %14 = arith.truncf %13 : vector<8x128xf32> to vector<8x128xbf16>
    %c0_11 = arith.constant 0 : index
    %c0_12 = arith.constant 0 : index
    %15 = vector.load %arg6[%c0_11, %c0_12] : memref<8x128xbf16, #tpu.memory_space<vmem>>, vector<8x128xbf16>
    tpu.vector_store %arg6[%c0_11, %c0_12], %14 {strides = array<i32>} : memref<8x128xbf16, #tpu.memory_space<vmem>>, vector<8x128xbf16>,
    return
  }
  func.func @transform_0(%arg0: i32) -> (i32, i32) {
    %c0_i32 = arith.constant 0 : i32
    %c0_i32_0 = arith.constant 0 : i32
    return %arg0, %c0_i32 : i32, i32
  }
  func.func @transform_1(%arg0: i32) -> (i32, i32) {
    %c0_i32 = arith.constant 0 : i32
    %c0_i32_0 = arith.constant 0 : i32
    %c0_i32_1 = arith.constant 0 : i32
    return %c0_i32, %c0_i32_0 : i32, i32
  }
  func.func @transform_2(%arg0: i32) -> (i32, i32) {
    %c0_i32 = arith.constant 0 : i32
    %c0_i32_0 = arith.constant 0 : i32
    %c0_i32_1 = arith.constant 0 : i32
    return %c0_i32, %c0_i32_0 : i32, i32
  }
  func.func @transform_3(%arg0: i32) -> (i32, i32) {
    %c0_i32 = arith.constant 0 : i32
    %c0_i32_0 = arith.constant 0 : i32
    %c0_i32_1 = arith.constant 0 : i32
    return %c0_i32, %c0_i32_0 : i32, i32
  }
  func.func @transform_4(%arg0: i32) -> (i32, i32) {
    %c0_i32 = arith.constant 0 : i32
    %c0_i32_0 = arith.constant 0 : i32
    %c0_i32_1 = arith.constant 0 : i32
    return %c0_i32, %c0_i32_0 : i32, i32
  }
  func.func @transform_5(%arg0: i32) -> (i32, i32) {
    %c0_i32 = arith.constant 0 : i32
    %c0_i32_0 = arith.constant 0 : i32
    return %c0_i32, %arg0 : i32, i32
  }
}

</mosaic_0001>

<llo_original>
// kernel: tpu_custom_call.1
$region0: #{tpu_custom_call.1}
  #allocation0 [shape = 'u32[]', space=smem, size = 0x4, offset = 0x4, fixed_abs, tag = 'smem constant byte address 0x4 - core index']
  #allocation1 [shape = 'u32[144,128]{1,0:T(1,128)}', space=vmem, size = 0x12000, scoped, tag = 'internal scratch']
  %s0 = inlined_call_operand.vmem [shape: bf16[128,72], index: 0, kind: input, shape index: {}]
  %s1 = inlined_call_operand.vmem [shape: bf16[72,128], index: 1, kind: input, shape index: {}]
  %s2 = inlined_call_operand.vmem [shape: f32[1,128], index: 2, kind: input, shape index: {}]
  %s3 = inlined_call_operand.vmem [shape: bf16[8,128], index: 3, kind: input, shape index: {}]
  %s4 = inlined_call_operand.vmem [shape: f32[8,1], index: 4, kind: input, shape index: {}]
  %s5 = inlined_call_operand.hbm [shape: bf16[8,128], index: 5, kind: output, shape index: {}]
  %s6 = sld [smem:[#allocation0]]
  $region30: #{tpu_custom_call.1} parent=0
    _
  %s8 = ssub.s32 1, %s6
  %s9 = scalar_select 0, %s8, %s6
  $region1: #{tpu_custom_call.1} parent=0
    #allocation2 [shape = 'u8[2048]{0}', space=vmem, size = 0x800, scoped, tag = 'output window, operand 0, single buffered']
    #allocation3 [shape = 's32[1]{0}', space=sflag, size = 0x4, scoped, tag = 'scoped memory for tpu_custom_call.1']
    %10 = vsyncpa [#allocation3], 0
    // Predicated region
    $region2: #{tpu_custom_call.1} parent=1 // pred_check
      _
    $region3: #{tpu_custom_call.1} parent=1 // pred_check_branch
      %12 = sbr.rel (0) target = $region5
    $region4: #{tpu_custom_call.1} parent=1 // pred_region
      _
    $region5: #{tpu_custom_call.1} parent=1 // pred_fallthru
      _
    // Predicated region
    $region6: #{tpu_custom_call.1} parent=1 // pred_check
      _
    $region7: #{tpu_custom_call.1} parent=1 // pred_check_branch
      %14 = sbr.rel (0) target = $region9
    $region8: #{tpu_custom_call.1} parent=1 // pred_region
      _
    $region9: #{tpu_custom_call.1} parent=1 // pred_fallthru
      _
    // Predicated region
    $region10: #{tpu_custom_call.1} parent=1 // pred_check
      _
    $region11: #{tpu_custom_call.1} parent=1 // pred_check_branch
      %16 = sbr.rel (0) target = $region13
    $region12: #{tpu_custom_call.1} parent=1 // pred_region
      _
    $region13: #{tpu_custom_call.1} parent=1 // pred_fallthru
      _
    // Predicated region
    $region14: #{tpu_custom_call.1} parent=1 // pred_check
      _
    $region15: #{tpu_custom_call.1} parent=1 // pred_check_branch
      %18 = sbr.rel (0) target = $region17
    $region16: #{tpu_custom_call.1} parent=1 // pred_region
      _
    $region17: #{tpu_custom_call.1} parent=1 // pred_fallthru
      _
    // Predicated region
    $region18: #{tpu_custom_call.1} parent=1 // pred_check
      _
    $region19: #{tpu_custom_call.1} parent=1 // pred_check_branch
      %20 = sbr.rel (0) target = $region21
    $region20: #{tpu_custom_call.1} parent=1 // pred_region
      _
    $region21: #{tpu_custom_call.1} parent=1 // pred_fallthru
      _
    %v22 = vld [vmem:[%s0] sm:$0xf]
    %v23 = vld [vmem:[%s0 + $0x4] sm:$0xf]
    %v24 = vld [vmem:[%s0 + $0x8] sm:$0xf]
    %v25 = vld [vmem:[%s0 + $0xc] sm:$0xf]
    %v26 = vld [vmem:[%s0 + $0x10] sm:$0xf]
    %v27 = vld [vmem:[%s0 + $0x14] sm:$0xf]
    %v28 = vld [vmem:[%s0 + $0x18] sm:$0xf]
    %v29 = vld [vmem:[%s0 + $0x1c] sm:$0xf]
    %v30 = vld [vmem:[%s0 + $0x20] sm:$0xf]
    %v31 = vld [vmem:[%s0 + $0x24] sm:$0xf]
    %v32 = vld [vmem:[%s0 + $0x28] sm:$0xf]
    %v33 = vld [vmem:[%s0 + $0x2c] sm:$0xf]
    %v34 = vld [vmem:[%s0 + $0x30] sm:$0xf]
    %v35 = vld [vmem:[%s0 + $0x34] sm:$0xf]
    %v36 = vld [vmem:[%s0 + $0x38] sm:$0xf]
    %v37 = vld [vmem:[%s0 + $0x3c] sm:$0xf]
    %v38 = vld [vmem:[%s1] sm:$0xf]
    %v39 = vld [vmem:[%s1 + $0x4] sm:$0xf]
    %v40 = vld [vmem:[%s1 + $0x8] sm:$0xf]
    %v41 = vld [vmem:[%s1 + $0xc] sm:$0xf]
    %v42 = vld [vmem:[%s1 + $0x10] sm:$0xf]
    %v43 = vld [vmem:[%s1 + $0x14] sm:$0xf]
    %v44 = vld [vmem:[%s1 + $0x18] sm:$0xf]
    %v45 = vld [vmem:[%s1 + $0x1c] sm:$0xf]
    %v46 = vld [vmem:[%s1 + $0x20] sm:$0xf]
    %v47 = vld [vmem:[%s2] sm:$0x1]
    %v49 = vlaneseq
    %v50 = vshrl.u32 %v49, 7
    %v51 = vsub.s32 0, %v50
    %v52 = vrot.slane %v47, %v51
    %v70 = vunpack.c.l.b16 %v22
    %v71 = vunpack.c.l.b16 %v23
    %v72 = vunpack.c.l.b16 %v24
    %v73 = vunpack.c.l.b16 %v25
    %v74 = vunpack.c.l.b16 %v26
    %v75 = vunpack.c.l.b16 %v27
    %v76 = vunpack.c.l.b16 %v28
    %v77 = vunpack.c.l.b16 %v29
    %v78 = vunpack.c.l.b16 %v30
    %v79 = vunpack.c.l.b16 %v31
    %v80 = vunpack.c.l.b16 %v32
    %v81 = vunpack.c.l.b16 %v33
    %v82 = vunpack.c.l.b16 %v34
    %v83 = vunpack.c.l.b16 %v35
    %v84 = vunpack.c.l.b16 %v36
    %v85 = vunpack.c.l.b16 %v37
    %v86 = vpack.c.b16 %v71, %v70
    %v87 = vpack.c.b16 %v73, %v72
    %v88 = vpack.c.b16 %v75, %v74
    %v89 = vpack.c.b16 %v77, %v76
    %v90 = vpack.c.b16 %v79, %v78
    %v91 = vpack.c.b16 %v81, %v80
    %v92 = vpack.c.b16 %v83, %v82
    %v93 = vpack.c.b16 %v85, %v84
    %v103 = vunpack.c.l.b16 %v38
    %v104 = vunpack.c.l.b16 %v39
    %v105 = vunpack.c.l.b16 %v40
    %v106 = vunpack.c.l.b16 %v41
    %v107 = vunpack.c.l.b16 %v42
    %v108 = vunpack.c.l.b16 %v43
    %v109 = vunpack.c.l.b16 %v44
    %v110 = vunpack.c.l.b16 %v45
    %v111 = vunpack.c.l.b16 %v46
    %v112 = vpack.c.b16 %v104, %v103
    %v113 = vpack.c.b16 %v106, %v105
    %v114 = vpack.c.b16 %v108, %v107
    %v115 = vpack.c.b16 %v110, %v109
    %v116 = vpack.c.b16 %v111, %v111
    %vm121 = vcmask 588800
    %v123 = vsel %vm121, %v86, 0
    %v126 = vsel %vm121, %v87, 0
    %v129 = vsel %vm121, %v88, 0
    %v132 = vsel %vm121, %v89, 0
    %v135 = vsel %vm121, %v90, 0
    %v138 = vsel %vm121, %v91, 0
    %v141 = vsel %vm121, %v92, 0
    %v144 = vsel %vm121, %v93, 0
    %vm146 = vcmask 1043456
    %v148 = vsel %vm146, %v116, 0
    %150 = vmatprep.subr.bf16.mxu0 0
    %151 = vmatpush1.bf16.msra.mxu0 0
    %152 = vmatprep.subr.bf16.mxu0 0
    %153 = vmatpush1.bf16.msra.mxu0 0
    %154 = vmatprep.subr.bf16.mxu0 0
    %155 = vmatpush1.bf16.msra.mxu0 0
    %156 = vmatprep.subr.bf16.mxu0 0
    %157 = vmatpush1.bf16.msra.mxu0 %v148
    %158 = vmatprep.subr.bf16.mxu0 0
    %159 = vmatpush1.bf16.msra.mxu0 %v115
    %160 = vmatprep.subr.bf16.mxu0 0
    %161 = vmatpush1.bf16.msra.mxu0 %v114
    %162 = vmatprep.subr.bf16.mxu0 0
    %163 = vmatpush1.bf16.msra.mxu0 %v113
    %164 = vmatprep.subr.bf16.mxu0 0
    %165 = vmatpush1.bf16.msra.mxu0 %v112
    %166 = vmatprep.subr.bf16.mxu0 0
    %167 = vmatpush2.bf16.msra.mxu0 0
    %168 = vmatprep.subr.bf16.mxu0 0
    %169 = vmatpush2.bf16.msra.mxu0 0
    %170 = vmatprep.subr.bf16.mxu0 0
    %171 = vmatpush2.bf16.msra.mxu0 0
    %172 = vmatprep.subr.bf16.mxu0 0
    %173 = vmatpush2.bf16.msra.mxu0 0
    %174 = vmatprep.subr.bf16.mxu0 0
    %175 = vmatpush2.bf16.msra.mxu0 0
    %176 = vmatprep.subr.bf16.mxu0 0
    %177 = vmatpush2.bf16.msra.mxu0 0
    %178 = vmatprep.subr.bf16.mxu0 0
    %179 = vmatpush2.bf16.msra.mxu0 0
    %180 = vmatprep.subr.bf16.mxu0 0
    %181 = vmatpush2.bf16.msra.mxu0 0
    %182 = vmatprep.mubr.bf16.mxu0 0
    %183 = vmatmul.mubr.bf16.gmra.mxu0 %v123
    %v184 = vpop.f32.mrf.mxu0
    %v185 = vadd.f32 %v52, %v184
    %v186 = vpop.f32.mrf.mxu0
    %v187 = vpop.f32.mrf.mxu0
    %v188 = vadd.f32 %v52, %v187
    %v189 = vpop.f32.mrf.mxu0
    %190 = vmatprep.mubr.bf16.mxu0 0
    %191 = vmatmul.mubr.bf16.gmra.mxu0 %v126
    %v192 = vpop.f32.mrf.mxu0
    %v193 = vadd.f32 %v52, %v192
    %v194 = vpop.f32.mrf.mxu0
    %v195 = vpop.f32.mrf.mxu0
    %v196 = vadd.f32 %v52, %v195
    %v197 = vpop.f32.mrf.mxu0
    %198 = vmatprep.mubr.bf16.mxu0 0
    %199 = vmatmul.mubr.bf16.gmra.mxu0 %v129
    %v200 = vpop.f32.mrf.mxu0
    %v201 = vadd.f32 %v52, %v200
    %v202 = vpop.f32.mrf.mxu0
    %v203 = vpop.f32.mrf.mxu0
    %v204 = vadd.f32 %v52, %v203
    %v205 = vpop.f32.mrf.mxu0
    %206 = vmatprep.mubr.bf16.mxu0 0
    %207 = vmatmul.mubr.bf16.gmra.mxu0 %v132
    %v208 = vpop.f32.mrf.mxu0
    %v209 = vadd.f32 %v52, %v208
    %v210 = vpop.f32.mrf.mxu0
    %v211 = vpop.f32.mrf.mxu0
    %v212 = vadd.f32 %v52, %v211
    %v213 = vpop.f32.mrf.mxu0
    %214 = vmatprep.mubr.bf16.mxu0 0
    %215 = vmatmul.mubr.bf16.gmra.mxu0 %v135
    %v216 = vpop.f32.mrf.mxu0
    %v217 = vadd.f32 %v52, %v216
    %v218 = vpop.f32.mrf.mxu0
    %v219 = vpop.f32.mrf.mxu0
    %v220 = vadd.f32 %v52, %v219
    %v221 = vpop.f32.mrf.mxu0
    %222 = vmatprep.mubr.bf16.mxu0 0
    %223 = vmatmul.mubr.bf16.gmra.mxu0 %v138
    %v224 = vpop.f32.mrf.mxu0
    %v225 = vadd.f32 %v52, %v224
    %v226 = vpop.f32.mrf.mxu0
    %v227 = vpop.f32.mrf.mxu0
    %v228 = vadd.f32 %v52, %v227
    %v229 = vpop.f32.mrf.mxu0
    %230 = vmatprep.mubr.bf16.mxu0 0
    %231 = vmatmul.mubr.bf16.gmra.mxu0 %v141
    %v232 = vpop.f32.mrf.mxu0
    %v233 = vadd.f32 %v52, %v232
    %v234 = vpop.f32.mrf.mxu0
    %v235 = vpop.f32.mrf.mxu0
    %v236 = vadd.f32 %v52, %v235
    %v237 = vpop.f32.mrf.mxu0
    %238 = vmatprep.mubr.bf16.mxu0 0
    %239 = vmatmul.mubr.bf16.gmra.mxu0 %v144
    %v240 = vpop.f32.mrf.mxu0
    %v241 = vadd.f32 %v52, %v240
    %v242 = vpop.f32.mrf.mxu0
    %v243 = vpop.f32.mrf.mxu0
    %v244 = vadd.f32 %v52, %v243
    %v245 = vpop.f32.mrf.mxu0
    %246 = vdwg.mxu0
    %v247 = vmax.f32 %v185, 0.0
    %v248 = vmax.f32 %v188, 0.0
    %v249 = vmax.f32 %v193, 0.0
    %v250 = vmax.f32 %v196, 0.0
    %v251 = vmax.f32 %v201, 0.0
    %v252 = vmax.f32 %v204, 0.0
    %v253 = vmax.f32 %v209, 0.0
    %v254 = vmax.f32 %v212, 0.0
    %v255 = vmax.f32 %v217, 0.0
    %v256 = vmax.f32 %v220, 0.0
    %v257 = vmax.f32 %v225, 0.0
    %v258 = vmax.f32 %v228, 0.0
    %v259 = vmax.f32 %v233, 0.0
    %v260 = vmax.f32 %v236, 0.0
    %v261 = vmax.f32 %v241, 0.0
    %v262 = vmax.f32 %v244, 0.0
    %v263 = vld [vmem:[%s3] sm:$0xf]
    %v264 = vpack.c.bf16 %v248, %v247
    %v265 = vpack.c.bf16 %v250, %v249
    %v266 = vpack.c.bf16 %v252, %v251
    %v267 = vpack.c.bf16 %v254, %v253
    %v268 = vpack.c.bf16 %v256, %v255
    %v269 = vpack.c.bf16 %v258, %v257
    %v270 = vpack.c.bf16 %v260, %v259
    %v271 = vpack.c.bf16 %v262, %v261
    %v272 = vld [vmem:[%s4] sm:$0xff]
    %274 = vset.pattern.permute.xlu0 0
    %275 = vperm.xlu0 %274, %v272
    %v276 = vpop.permute.xlu0 %275
    %278 = vmatprep.subr.bf16.mxu0 0
    %279 = vmatpush1.bf16.xpose.msra.mxu0 %v271
    %280 = vmatprep.subr.bf16.mxu0 0
    %281 = vmatpush1.bf16.xpose.msra.mxu0 %v270
    %282 = vmatprep.subr.bf16.mxu0 0
    %283 = vmatpush1.bf16.xpose.msra.mxu0 %v269
    %284 = vmatprep.subr.bf16.mxu0 0
    %285 = vmatpush1.bf16.xpose.msra.mxu0 %v268
    %286 = vmatprep.subr.bf16.mxu0 0
    %287 = vmatpush1.bf16.xpose.msra.mxu0 %v267
    %288 = vmatprep.subr.bf16.mxu0 0
    %289 = vmatpush1.bf16.xpose.msra.mxu0 %v266
    %290 = vmatprep.subr.bf16.mxu0 0
    %291 = vmatpush1.bf16.xpose.msra.mxu0 %v265
    %292 = vmatprep.subr.bf16.mxu0 0
    %293 = vmatpush1.bf16.xpose.msra.mxu0 %v264
    %294 = vmatprep.subr.bf16.mxu0 0
    %295 = vmatpush2.bf16.xpose.msra.mxu0 0
    %296 = vmatprep.subr.bf16.mxu0 0
    %297 = vmatpush2.bf16.xpose.msra.mxu0 0
    %298 = vmatprep.subr.bf16.mxu0 0
    %299 = vmatpush2.bf16.xpose.msra.mxu0 0
    %300 = vmatprep.subr.bf16.mxu0 0
    %301 = vmatpush2.bf16.xpose.msra.mxu0 0
    %302 = vmatprep.subr.bf16.mxu0 0
    %303 = vmatpush2.bf16.xpose.msra.mxu0 0
    %304 = vmatprep.subr.bf16.mxu0 0
    %305 = vmatpush2.bf16.xpose.msra.mxu0 0
    %306 = vmatprep.subr.bf16.mxu0 0
    %307 = vmatpush2.bf16.xpose.msra.mxu0 0
    %308 = vmatprep.subr.bf16.mxu0 0
    %309 = vmatpush2.bf16.xpose.msra.mxu0 0
    %310 = vmatprep.mubr.bf16.mxu0 0
    %311 = vmatmul.mubr.bf16.gmra.mxu0 %v263
    %v312 = vpop.f32.mrf.mxu0
    %v313 = vadd.f32 %v276, %v312
    %v314 = vpop.f32.mrf.mxu0
    %v315 = vpop.f32.mrf.mxu0
    %v316 = vpop.f32.mrf.mxu0
    %317 = vdwg.mxu0
    %v318 = vpack.c.bf16 %v313, %v313
    %319 = vst [vmem:[#allocation2] sm:$0xf] %v318
    // Predicated region
    $region22: #{tpu_custom_call.1} parent=1 // pred_check
      _
    $region23: #{tpu_custom_call.1} parent=1 // pred_check_branch
      %321 = sbr.rel (0) target = $region25
    $region24: #{tpu_custom_call.1} parent=1 // pred_region
      %s323 = ssub.s32 64, 64
      %324 = vsyncadd [#allocation3], %s323
      %s326 = sshll.u32 [#allocation2], 4
      %s327 = int_to_ptr.vmem [resolvable:$true] %s326
      %329 = dma.vmem_to_hbm [thread:$0]  %s327, 64, %s5, [#allocation3]
    $region25: #{tpu_custom_call.1} parent=1 // pred_fallthru
      _
    // Predicated region
    $region26: #{tpu_custom_call.1} parent=1 // pred_check
      _
    $region27: #{tpu_custom_call.1} parent=1 // pred_check_branch
      %331 = sbr.rel (0) target = $region29
    $region28: #{tpu_custom_call.1} parent=1 // pred_region
      %332 = dma.done [#allocation3], 64
    $region29: #{tpu_custom_call.1} parent=1 // pred_fallthru
      _
    %333 = vsyncpa [#allocation3], 1

</llo_original>
